<compile_context>
chip_gen: v7x
topology: tpu7x:2x2x1
jax: 0.10.0
libtpu: 0.0.40
codegen_flags: <defaults>
</compile_context>

<pallas_src>
import functools

import jax
import jax.numpy as jnp
from jax.experimental import pallas as pl
from jax.experimental.pallas import tpu as pltpu


def _round_up(n, m):
    return ((n + m - 1) // m) * m


def _fused_mlp_kernel(alpha_ref, x_ref, *rest, n_layers: int, last_act: bool):
    """All layers fused. rest = (w0, b0, w1, b1, ..., w_{L-1}, b_{L-1}, o_ref)."""
    o_ref = rest[-1]
    wb = rest[:-1]
    alpha = alpha_ref[0, 0]              # single SMEM read, reused for every layer
    h = x_ref[...]
    for i in range(n_layers):            # static Python loop: dim_list is static
        w = wb[2 * i][...]               # (Din_p, Dout_p), resident in VMEM
        b = wb[2 * i + 1][...]           # (1, Dout_p) -> broadcasts over batch rows
        z = jnp.dot(h, w, preferred_element_type=jnp.float32) + b
        if i < n_layers - 1 or last_act:
            z = jnp.where(z > 0, z, alpha * z)   # PReLU, shared scalar alpha
        h = z
    o_ref[...] = h.astype(o_ref.dtype)


def mlp_forward(x, params, prelu_alpha, last_act=False):
    """x: (B, Din) f32; params: list of (w (Din, Dout) f32, b (Dout,) f32)."""
    B, Din = x.shape
    n_layers = len(params)
    dims = [Din] + [w.shape[1] for w, _ in params]

    # ---- pad feature dims to multiples of 128 (lane-dense), batch to 8-aligned tiles ----
    LANE = 128
    dims_p = [_round_up(d, LANE) for d in dims]

    tb = min(512, _round_up(B, 8))       # batch tile (multiple of 8); weights stay resident
    Bp = _round_up(B, tb)
    grid = (Bp // tb,)

    xp = jnp.zeros((Bp, dims_p[0]), jnp.float32).at[:B, :Din].set(x)

    padded = []
    for i, (w, b) in enumerate(params):
        wp = (jnp.zeros((dims_p[i], dims_p[i + 1]), jnp.float32)
              .at[: dims[i], : dims[i + 1]].set(w))
        bp = jnp.zeros((1, dims_p[i + 1]), jnp.float32).at[0, : dims[i + 1]].set(b)
        padded += [wp, bp]

    a2 = jnp.asarray(prelu_alpha, jnp.float32).reshape(1, 1)

    in_specs = [pl.BlockSpec(memory_space=pltpu.MemorySpace.SMEM)]        # alpha (1,1) scalar
    in_specs.append(pl.BlockSpec((tb, dims_p[0]), lambda g: (g, 0)))      # x: batch-tiled
    for i in range(n_layers):
        in_specs.append(pl.BlockSpec((dims_p[i], dims_p[i + 1]), lambda g: (0, 0)))  # w_i resident
        in_specs.append(pl.BlockSpec((1, dims_p[i + 1]), lambda g: (0, 0)))          # b_i resident
    out_spec = pl.BlockSpec((tb, dims_p[-1]), lambda g: (g, 0))

    flops = sum(2 * B * dims[i] * dims[i + 1] for i in range(n_layers))
    bytes_accessed = 4 * (B * dims[0] + B * dims[-1]
                          + sum(dims[i] * dims[i + 1] + dims[i + 1] for i in range(n_layers)))
    cost = pl.CostEstimate(flops=flops, transcendentals=0, bytes_accessed=bytes_accessed)

    kernel = functools.partial(_fused_mlp_kernel, n_layers=n_layers, last_act=last_act)
    out_p = pl.pallas_call(
        kernel,
        out_shape=jax.ShapeDtypeStruct((Bp, dims_p[-1]), jnp.float32),
        grid=grid,
        in_specs=in_specs,
        out_specs=out_spec,
        compiler_params=pltpu.CompilerParams(
            dimension_semantics=("parallel",),   # batch tiles split across TCs (v7x megacore)
        ),
        cost_estimate=cost,
    )(a2, xp, *padded)

    return out_p[:B, : dims[-1]]


def init_mlp_params(key, dim_list):
    """Deterministic synthetic init (kaiming-uniform-like); bias = 0 as in init_weights()."""
    params = []
    for i in range(len(dim_list) - 1):
        key, sub = jax.random.split(key)
        fan_in = dim_list[i]
        bound = jnp.sqrt(6.0 / fan_in)
        # stored as (in, out) == transpose of PyTorch's (out, in)
        w = jax.random.uniform(sub, (dim_list[i], dim_list[i + 1]),
                               minval=-bound, maxval=bound, dtype=jnp.float32)
        b = jnp.zeros((dim_list[i + 1],), jnp.float32)
        params.append((w, b))
    return params


if __name__ == "__main__":
    key = jax.random.PRNGKey(0)
    dim_list = [32, 64, 48, 16]   # small synthetic MLP consistent with MLP(dim_list)
    batch = 8

    kx, kp = jax.random.split(key)
    x = jax.random.normal(kx, (batch, dim_list[0]), dtype=jnp.float32)
    params = init_mlp_params(kp, dim_list)
    prelu_alpha = jnp.float32(0.25)  # nn.PReLU() default, shared across layers

    out = mlp_forward(x, params, prelu_alpha, last_act=False)
    jax.block_until_ready(out)

    # sanity check against plain-JAX reference
    ref = x
    for i, (w, b) in enumerate(params):
        ref = ref @ w + b
        if i < len(params) - 1:
            ref = jnp.where(ref > 0, ref, prelu_alpha * ref)
    assert out.shape == (batch, dim_list[-1])
    assert jnp.allclose(out, ref, atol=1e-5, rtol=1e-5)

    print("KERNEL_OK")
</pallas_src>

<mosaic_0001>
module attributes {stable_mosaic.version = 11 : i64} {
  func.func @_fused_mlp_kernel(%arg0: i32, %arg1: memref<1x1xf32, #tpu.memory_space<smem>>, %arg2: memref<8x128xf32, #tpu.memory_space<vmem>>, %arg3: memref<128x128xf32, #tpu.memory_space<vmem>>, %arg4: memref<1x128xf32, #tpu.memory_space<vmem>>, %arg5: memref<128x128xf32, #tpu.memory_space<vmem>>, %arg6: memref<1x128xf32, #tpu.memory_space<vmem>>, %arg7: memref<128x128xf32, #tpu.memory_space<vmem>>, %arg8: memref<1x128xf32, #tpu.memory_space<vmem>>, %arg9: memref<8x128xf32, #tpu.memory_space<vmem>>) attributes {dimension_semantics = [#tpu.dimension_semantics<parallel>], iteration_bounds = array<i64: 1>, scalar_prefetch = 0 : i64, scratch_operands = 0 : i64, tpu.core_type = #tpu.core_type<tc>, window_params = [{transform_indices = @transform_0, window_bounds = array<i64: 1, 1>}, {transform_indices = @transform_1, window_bounds = array<i64: 8, 128>}, {pipeline_mode = #tpu.pipeline_mode<synchronous>, transform_indices = @transform_2, window_bounds = array<i64: 128, 128>}, {pipeline_mode = #tpu.pipeline_mode<synchronous>, transform_indices = @transform_3, window_bounds = array<i64: 1, 128>}, {pipeline_mode = #tpu.pipeline_mode<synchronous>, transform_indices = @transform_4, window_bounds = array<i64: 128, 128>}, {pipeline_mode = #tpu.pipeline_mode<synchronous>, transform_indices = @transform_5, window_bounds = array<i64: 1, 128>}, {pipeline_mode = #tpu.pipeline_mode<synchronous>, transform_indices = @transform_6, window_bounds = array<i64: 128, 128>}, {pipeline_mode = #tpu.pipeline_mode<synchronous>, transform_indices = @transform_7, window_bounds = array<i64: 1, 128>}, {transform_indices = @transform_8, window_bounds = array<i64: 8, 128>}]} {
    %c0 = arith.constant 0 : index
    %c0_0 = arith.constant 0 : index
    %0 = memref.load %arg1[%c0, %c0_0] : memref<1x1xf32, #tpu.memory_space<smem>>
    %c0_1 = arith.constant 0 : index
    %c0_2 = arith.constant 0 : index
    %1 = vector.load %arg2[%c0_1, %c0_2] : memref<8x128xf32, #tpu.memory_space<vmem>>, vector<8x128xf32>
    %c0_3 = arith.constant 0 : index
    %c0_4 = arith.constant 0 : index
    %2 = vector.load %arg3[%c0_3, %c0_4] : memref<128x128xf32, #tpu.memory_space<vmem>>, vector<128x128xf32>
    %c0_5 = arith.constant 0 : index
    %c0_6 = arith.constant 0 : index
    %3 = vector.load %arg4[%c0_5, %c0_6] : memref<1x128xf32, #tpu.memory_space<vmem>>, vector<1x128xf32>
    %cst = arith.constant dense<0.000000e+00> : vector<8x128xf32>
    %4 = tpu.matmul %1, %2, %cst {dimension_numbers = #tpu.dot_dimension_numbers<[1], [0], [0], [1], [0, 0, 1, 1], [], []>} : vector<8x128xf32>, vector<128x128xf32>, vector<8x128xf32> -> vector<8x128xf32>
    %5 = vector.broadcast %3 : vector<1x128xf32> to vector<8x128xf32>
    %6 = arith.addf %4, %5 : vector<8x128xf32>
    %cst_7 = arith.constant 0.000000e+00 : f32
    %7 = vector.broadcast %cst_7 : f32 to vector<8x128xf32>
    %8 = arith.cmpf ogt, %6, %7 : vector<8x128xf32>
    %9 = vector.broadcast %0 : f32 to vector<8x128xf32>
    %10 = arith.mulf %9, %6 : vector<8x128xf32>
    %11 = arith.select %8, %6, %10 : vector<8x128xi1>, vector<8x128xf32>
    %c0_8 = arith.constant 0 : index
    %c0_9 = arith.constant 0 : index
    %12 = vector.load %arg5[%c0_8, %c0_9] : memref<128x128xf32, #tpu.memory_space<vmem>>, vector<128x128xf32>
    %c0_10 = arith.constant 0 : index
    %c0_11 = arith.constant 0 : index
    %13 = vector.load %arg6[%c0_10, %c0_11] : memref<1x128xf32, #tpu.memory_space<vmem>>, vector<1x128xf32>
    %cst_12 = arith.constant dense<0.000000e+00> : vector<8x128xf32>
    %14 = tpu.matmul %11, %12, %cst_12 {dimension_numbers = #tpu.dot_dimension_numbers<[1], [0], [0], [1], [0, 0, 1, 1], [], []>} : vector<8x128xf32>, vector<128x128xf32>, vector<8x128xf32> -> vector<8x128xf32>
    %15 = vector.broadcast %13 : vector<1x128xf32> to vector<8x128xf32>
    %16 = arith.addf %14, %15 : vector<8x128xf32>
    %cst_13 = arith.constant 0.000000e+00 : f32
    %17 = vector.broadcast %cst_13 : f32 to vector<8x128xf32>
    %18 = arith.cmpf ogt, %16, %17 : vector<8x128xf32>
    %19 = vector.broadcast %0 : f32 to vector<8x128xf32>
    %20 = arith.mulf %19, %16 : vector<8x128xf32>
    %21 = arith.select %18, %16, %20 : vector<8x128xi1>, vector<8x128xf32>
    %c0_14 = arith.constant 0 : index
    %c0_15 = arith.constant 0 : index
    %22 = vector.load %arg7[%c0_14, %c0_15] : memref<128x128xf32, #tpu.memory_space<vmem>>, vector<128x128xf32>
    %c0_16 = arith.constant 0 : index
    %c0_17 = arith.constant 0 : index
    %23 = vector.load %arg8[%c0_16, %c0_17] : memref<1x128xf32, #tpu.memory_space<vmem>>, vector<1x128xf32>
    %cst_18 = arith.constant dense<0.000000e+00> : vector<8x128xf32>
    %24 = tpu.matmul %21, %22, %cst_18 {dimension_numbers = #tpu.dot_dimension_numbers<[1], [0], [0], [1], [0, 0, 1, 1], [], []>} : vector<8x128xf32>, vector<128x128xf32>, vector<8x128xf32> -> vector<8x128xf32>
    %25 = vector.broadcast %23 : vector<1x128xf32> to vector<8x128xf32>
    %26 = arith.addf %24, %25 : vector<8x128xf32>
    %c0_19 = arith.constant 0 : index
    %c0_20 = arith.constant 0 : index
    %27 = vector.load %arg9[%c0_19, %c0_20] : memref<8x128xf32, #tpu.memory_space<vmem>>, vector<8x128xf32>
    tpu.vector_store %arg9[%c0_19, %c0_20], %26 {strides = array<i32>} : memref<8x128xf32, #tpu.memory_space<vmem>>, vector<8x128xf32>,
    return
  }
  func.func @transform_0(%arg0: i32) -> (i32, i32) {
    %c0_i32 = arith.constant 0 : i32
    %c0_i32_0 = arith.constant 0 : i32
    %c0_i32_1 = arith.constant 0 : i32
    return %c0_i32, %c0_i32_0 : i32, i32
  }
  func.func @transform_1(%arg0: i32) -> (i32, i32) {
    %c0_i32 = arith.constant 0 : i32
    %c0_i32_0 = arith.constant 0 : i32
    return %arg0, %c0_i32 : i32, i32
  }
  func.func @transform_2(%arg0: i32) -> (i32, i32) {
    %c0_i32 = arith.constant 0 : i32
    %c0_i32_0 = arith.constant 0 : i32
    %c0_i32_1 = arith.constant 0 : i32
    return %c0_i32, %c0_i32_0 : i32, i32
  }
  func.func @transform_3(%arg0: i32) -> (i32, i32) {
    %c0_i32 = arith.constant 0 : i32
    %c0_i32_0 = arith.constant 0 : i32
    %c0_i32_1 = arith.constant 0 : i32
    return %c0_i32, %c0_i32_0 : i32, i32
  }
  func.func @transform_4(%arg0: i32) -> (i32, i32) {
    %c0_i32 = arith.constant 0 : i32
    %c0_i32_0 = arith.constant 0 : i32
    %c0_i32_1 = arith.constant 0 : i32
    return %c0_i32, %c0_i32_0 : i32, i32
  }
  func.func @transform_5(%arg0: i32) -> (i32, i32) {
    %c0_i32 = arith.constant 0 : i32
    %c0_i32_0 = arith.constant 0 : i32
    %c0_i32_1 = arith.constant 0 : i32
    return %c0_i32, %c0_i32_0 : i32, i32
  }
  func.func @transform_6(%arg0: i32) -> (i32, i32) {
    %c0_i32 = arith.constant 0 : i32
    %c0_i32_0 = arith.constant 0 : i32
    %c0_i32_1 = arith.constant 0 : i32
    return %c0_i32, %c0_i32_0 : i32, i32
  }
  func.func @transform_7(%arg0: i32) -> (i32, i32) {
    %c0_i32 = arith.constant 0 : i32
    %c0_i32_0 = arith.constant 0 : i32
    %c0_i32_1 = arith.constant 0 : i32
    return %c0_i32, %c0_i32_0 : i32, i32
  }
  func.func @transform_8(%arg0: i32) -> (i32, i32) {
    %c0_i32 = arith.constant 0 : i32
    %c0_i32_0 = arith.constant 0 : i32
    return %arg0, %c0_i32 : i32, i32
  }
}

</mosaic_0001>

<llo_original>
// kernel: tpu_custom_call.1
$region0: #{tpu_custom_call.1}
  #allocation0 [shape = 'u32[]', space=smem, size = 0x4, offset = 0x4, fixed_abs, tag = 'smem constant byte address 0x4 - core index']
  #allocation1 [shape = 'u32[144,128]{1,0:T(1,128)}', space=vmem, size = 0x12000, scoped, tag = 'internal scratch']
  #allocation2 [shape = 'f32[1,1]{1,0:T(1,128)S(6)}', space=smem, size = 0x200, scoped, tag = 'scoped memory for tpu_custom_call.1']
  %s0 = inlined_call_operand.<no memory space> [shape: f32[1,1], index: 0, kind: input, shape index: {}]
  %s1 = inlined_call_operand.hbm [shape: f32[8,128], index: 1, kind: input, shape index: {}]
  %s2 = inlined_call_operand.hbm [shape: f32[128,128], index: 2, kind: input, shape index: {}]
  %s3 = inlined_call_operand.vmem [shape: f32[1,128], index: 3, kind: input, shape index: {}]
  %s4 = inlined_call_operand.hbm [shape: f32[128,128], index: 4, kind: input, shape index: {}]
  %s5 = inlined_call_operand.vmem [shape: f32[1,128], index: 5, kind: input, shape index: {}]
  %s6 = inlined_call_operand.hbm [shape: f32[128,128], index: 6, kind: input, shape index: {}]
  %s7 = inlined_call_operand.vmem [shape: f32[1,128], index: 7, kind: input, shape index: {}]
  %s8 = inlined_call_operand.hbm [shape: f32[8,128], index: 8, kind: output, shape index: {}]
  %s9 = sld [smem:[#allocation0]]
  $region58: #{tpu_custom_call.1} parent=0
    _
  %s11 = ssub.s32 1, %s9
  %s12 = scalar_select 0, %s11, %s9
  %13 = sst [smem:[#allocation2]] %s0
  $region1: #{tpu_custom_call.1} parent=0
    #allocation3 [shape = 'u8[4096]{0}', space=vmem, size = 0x1000, scoped, tag = 'input window, operand 1, single buffered']
    #allocation4 [shape = 's32[1]{0}', space=sflag, size = 0x4, scoped, tag = 'scoped memory for tpu_custom_call.1']
    #allocation5 [shape = 's32[1]{0}', space=sflag, size = 0x4, scoped, tag = 'scoped memory for tpu_custom_call.1']
    #allocation6 [shape = 'u8[65536]{0}', space=vmem, size = 0x10000, scoped, tag = 'input window, operand 2, single buffered']
    #allocation7 [shape = 's32[1]{0}', space=sflag, size = 0x4, scoped, tag = 'scoped memory for tpu_custom_call.1']
    #allocation8 [shape = 'u8[65536]{0}', space=vmem, size = 0x10000, scoped, tag = 'input window, operand 4, single buffered']
    #allocation9 [shape = 'u8[65536]{0}', space=vmem, size = 0x10000, scoped, tag = 'input window, operand 6, single buffered']
    #allocation10 [shape = 's32[1]{0}', space=sflag, size = 0x4, scoped, tag = 'scoped memory for tpu_custom_call.1']
    #allocation11 [shape = 'u8[4096]{0}', space=vmem, size = 0x1000, scoped, tag = 'output window, operand 0, single buffered']
    %14 = vsyncpa [#allocation4], 0
    %15 = vsyncpa [#allocation7], 0
    %16 = vsyncpa [#allocation10], 0
    %17 = vsyncpa [#allocation5], 0
    // Predicated region
    $region2: #{tpu_custom_call.1} parent=1 // pred_check
      _
    $region3: #{tpu_custom_call.1} parent=1 // pred_check_branch
      %19 = sbr.rel (0) target = $region5
    $region4: #{tpu_custom_call.1} parent=1 // pred_region
      _
    $region5: #{tpu_custom_call.1} parent=1 // pred_fallthru
      _
    // Predicated region
    $region6: #{tpu_custom_call.1} parent=1 // pred_check
      _
    $region7: #{tpu_custom_call.1} parent=1 // pred_check_branch
      %21 = sbr.rel (0) target = $region9
    $region8: #{tpu_custom_call.1} parent=1 // pred_region
      %s23 = ssub.s32 128, 128
      %24 = vsyncadd [#allocation4], %s23
      %s26 = sshll.u32 [#allocation3], 4
      %s27 = int_to_ptr.vmem [resolvable:$true] %s26
      %29 = dma.hbm_to_vmem [thread:$0]  %s1, 128, %s27, [#allocation4]
    $region9: #{tpu_custom_call.1} parent=1 // pred_fallthru
      _
    // Predicated region
    $region10: #{tpu_custom_call.1} parent=1 // pred_check
      _
    $region11: #{tpu_custom_call.1} parent=1 // pred_check_branch
      %31 = sbr.rel (0) target = $region13
    $region12: #{tpu_custom_call.1} parent=1 // pred_region
      %s33 = ssub.s32 2048, 2048
      %34 = vsyncadd [#allocation7], %s33
      %s35 = sshll.u32 [#allocation6], 4
      %s36 = int_to_ptr.vmem [resolvable:$true] %s35
      %41 = dma.hbm_to_vmem [thread:$0]  %s2, 2048, %s36, [#allocation7], 128, 128, 8
    $region13: #{tpu_custom_call.1} parent=1 // pred_fallthru
      _
    // Predicated region
    $region14: #{tpu_custom_call.1} parent=1 // pred_check
      _
    $region15: #{tpu_custom_call.1} parent=1 // pred_check_branch
      %43 = sbr.rel (0) target = $region17
    $region16: #{tpu_custom_call.1} parent=1 // pred_region
      _
    $region17: #{tpu_custom_call.1} parent=1 // pred_fallthru
      _
    // Predicated region
    $region18: #{tpu_custom_call.1} parent=1 // pred_check
      _
    $region19: #{tpu_custom_call.1} parent=1 // pred_check_branch
      %45 = sbr.rel (0) target = $region21
    $region20: #{tpu_custom_call.1} parent=1 // pred_region
      %s47 = ssub.s32 2048, 2048
      %48 = vsyncadd [#allocation7], %s47
      %s49 = sshll.u32 [#allocation8], 4
      %s50 = int_to_ptr.vmem [resolvable:$true] %s49
      %55 = dma.hbm_to_vmem [thread:$0]  %s4, 2048, %s50, [#allocation7], 128, 128, 8
    $region21: #{tpu_custom_call.1} parent=1 // pred_fallthru
      _
    // Predicated region
    $region22: #{tpu_custom_call.1} parent=1 // pred_check
      _
    $region23: #{tpu_custom_call.1} parent=1 // pred_check_branch
      %57 = sbr.rel (0) target = $region25
    $region24: #{tpu_custom_call.1} parent=1 // pred_region
      _
    $region25: #{tpu_custom_call.1} parent=1 // pred_fallthru
      _
    // Predicated region
    $region26: #{tpu_custom_call.1} parent=1 // pred_check
      _
    $region27: #{tpu_custom_call.1} parent=1 // pred_check_branch
      %59 = sbr.rel (0) target = $region29
    $region28: #{tpu_custom_call.1} parent=1 // pred_region
      %s61 = ssub.s32 2048, 2048
      %62 = vsyncadd [#allocation10], %s61
      %s63 = sshll.u32 [#allocation9], 4
      %s64 = int_to_ptr.vmem [resolvable:$true] %s63
      %69 = dma.hbm_to_vmem [thread:$0]  %s6, 2048, %s64, [#allocation10], 128, 128, 8
    $region29: #{tpu_custom_call.1} parent=1 // pred_fallthru
      _
    // Predicated region
    $region30: #{tpu_custom_call.1} parent=1 // pred_check
      _
    $region31: #{tpu_custom_call.1} parent=1 // pred_check_branch
      %71 = sbr.rel (0) target = $region33
    $region32: #{tpu_custom_call.1} parent=1 // pred_region
      _
    $region33: #{tpu_custom_call.1} parent=1 // pred_fallthru
      _
    // Predicated region
    $region34: #{tpu_custom_call.1} parent=1 // pred_check
      _
    $region35: #{tpu_custom_call.1} parent=1 // pred_check_branch
      %73 = sbr.rel (0) target = $region37
    $region36: #{tpu_custom_call.1} parent=1 // pred_region
      %74 = dma.done [#allocation4], 128
    $region37: #{tpu_custom_call.1} parent=1 // pred_fallthru
      _
    // Predicated region
    $region38: #{tpu_custom_call.1} parent=1 // pred_check
      _
    $region39: #{tpu_custom_call.1} parent=1 // pred_check_branch
      %76 = sbr.rel (0) target = $region41
    $region40: #{tpu_custom_call.1} parent=1 // pred_region
      %77 = dma.done [#allocation7], 2048
    $region41: #{tpu_custom_call.1} parent=1 // pred_fallthru
      _
    // Predicated region
    $region42: #{tpu_custom_call.1} parent=1 // pred_check
      _
    $region43: #{tpu_custom_call.1} parent=1 // pred_check_branch
      %79 = sbr.rel (0) target = $region45
    $region44: #{tpu_custom_call.1} parent=1 // pred_region
      %80 = dma.done [#allocation7], 2048
    $region45: #{tpu_custom_call.1} parent=1 // pred_fallthru
      _
    // Predicated region
    $region46: #{tpu_custom_call.1} parent=1 // pred_check
      _
    $region47: #{tpu_custom_call.1} parent=1 // pred_check_branch
      %82 = sbr.rel (0) target = $region49
    $region48: #{tpu_custom_call.1} parent=1 // pred_region
      %83 = dma.done [#allocation10], 2048
    $region49: #{tpu_custom_call.1} parent=1 // pred_fallthru
      _
    %s84 = sld [smem:[#allocation2]]
    %v85 = vld [vmem:[#allocation3] sm:$0xff]
    %v86 = vld [vmem:[#allocation6] sm:$0xff]
    %v87 = vld [vmem:[#allocation6 + $0x8] sm:$0xff]
    %v88 = vld [vmem:[#allocation6 + $0x10] sm:$0xff]
    %v89 = vld [vmem:[#allocation6 + $0x18] sm:$0xff]
    %v90 = vld [vmem:[#allocation6 + $0x20] sm:$0xff]
    %v91 = vld [vmem:[#allocation6 + $0x28] sm:$0xff]
    %v92 = vld [vmem:[#allocation6 + $0x30] sm:$0xff]
    %v93 = vld [vmem:[#allocation6 + $0x38] sm:$0xff]
    %v94 = vld [vmem:[#allocation6 + $0x40] sm:$0xff]
    %v95 = vld [vmem:[#allocation6 + $0x48] sm:$0xff]
    %v96 = vld [vmem:[#allocation6 + $0x50] sm:$0xff]
    %v97 = vld [vmem:[#allocation6 + $0x58] sm:$0xff]
    %v98 = vld [vmem:[#allocation6 + $0x60] sm:$0xff]
    %v99 = vld [vmem:[#allocation6 + $0x68] sm:$0xff]
    %v100 = vld [vmem:[#allocation6 + $0x70] sm:$0xff]
    %v101 = vld [vmem:[#allocation6 + $0x78] sm:$0xff]
    %v102 = vld [vmem:[%s3] sm:$0x1]
    %v104 = vlaneseq
    %v105 = vshrl.u32 %v104, 7
    %v106 = vsub.s32 0, %v105
    %v107 = vrot.slane %v102, %v106
    %109 = vmatprep.subr.mxu0 0.0
    %110 = vmatpush1.msra.mxu0 %v86
    %111 = vmatprep.subr.mxu0 0.0
    %112 = vmatpush1.msra.mxu0 %v87
    %113 = vmatprep.subr.mxu0 0.0
    %114 = vmatpush1.msra.mxu0 %v88
    %115 = vmatprep.subr.mxu0 0.0
    %116 = vmatpush1.msra.mxu0 %v89
    %117 = vmatprep.subr.mxu0 0.0
    %118 = vmatpush1.msra.mxu0 %v90
    %119 = vmatprep.subr.mxu0 0.0
    %120 = vmatpush1.msra.mxu0 %v91
    %121 = vmatprep.subr.mxu0 0.0
    %122 = vmatpush1.msra.mxu0 %v92
    %123 = vmatprep.subr.mxu0 0.0
    %124 = vmatpush1.msra.mxu0 %v93
    %125 = vmatprep.subr.mxu0 0.0
    %126 = vmatpush1.msra.mxu0 %v94
    %127 = vmatprep.subr.mxu0 0.0
    %128 = vmatpush1.msra.mxu0 %v95
    %129 = vmatprep.subr.mxu0 0.0
    %130 = vmatpush1.msra.mxu0 %v96
    %131 = vmatprep.subr.mxu0 0.0
    %132 = vmatpush1.msra.mxu0 %v97
    %133 = vmatprep.subr.mxu0 0.0
    %134 = vmatpush1.msra.mxu0 %v98
    %135 = vmatprep.subr.mxu0 0.0
    %136 = vmatpush1.msra.mxu0 %v99
    %137 = vmatprep.subr.mxu0 0.0
    %138 = vmatpush1.msra.mxu0 %v100
    %139 = vmatprep.subr.mxu0 0.0
    %140 = vmatpush1.msra.mxu0 %v101
    %141 = vmatprep.subr.mxu0 0.0
    %142 = vmatpush1.msra.mxu0 0.0
    %143 = vmatprep.subr.mxu0 0.0
    %144 = vmatpush1.msra.mxu0 0.0
    %145 = vmatprep.subr.mxu0 0.0
    %146 = vmatpush1.msra.mxu0 0.0
    %147 = vmatprep.subr.mxu0 0.0
    %148 = vmatpush1.msra.mxu0 0.0
    %149 = vmatprep.subr.mxu0 0.0
    %150 = vmatpush1.msra.mxu0 0.0
    %151 = vmatprep.subr.mxu0 0.0
    %152 = vmatpush1.msra.mxu0 0.0
    %153 = vmatprep.subr.mxu0 0.0
    %154 = vmatpush1.msra.mxu0 0.0
    %155 = vmatprep.subr.mxu0 0.0
    %156 = vmatpush1.msra.mxu0 0.0
    %157 = vmatprep.subr.mxu0 0.0
    %158 = vmatpush1.msra.mxu0 0.0
    %159 = vmatprep.subr.mxu0 0.0
    %160 = vmatpush1.msra.mxu0 0.0
    %161 = vmatprep.subr.mxu0 0.0
    %162 = vmatpush1.msra.mxu0 0.0
    %163 = vmatprep.subr.mxu0 0.0
    %164 = vmatpush1.msra.mxu0 0.0
    %165 = vmatprep.subr.mxu0 0.0
    %166 = vmatpush1.msra.mxu0 0.0
    %167 = vmatprep.subr.mxu0 0.0
    %168 = vmatpush1.msra.mxu0 0.0
    %169 = vmatprep.subr.mxu0 0.0
    %170 = vmatpush1.msra.mxu0 0.0
    %171 = vmatprep.subr.mxu0 0.0
    %172 = vmatpush1.msra.mxu0 0.0
    %173 = vmatprep.mubr.f32.mxu0 0.0
    %174 = vmatmul.mubr.f32.gmra.mrb[0].mxu0 %v85
    %v175 = vpop.f32.mrb[0].mxu0
    %v176 = vadd.f32 %v107, %v175
    %v177 = vpop.f32.mrb[0].mxu0
    %178 = vdwg.mxu0
    %vm179 = vcmp.gt.f32.partialorder %v176, 0.0
    %v180 = vstv %s84
    %v181 = vmul.f32 %v180, %v176
    %v182 = vsel %vm179, %v176, %v181
    %v183 = vld [vmem:[#allocation8] sm:$0xff]
    %v184 = vld [vmem:[#allocation8 + $0x8] sm:$0xff]
    %v185 = vld [vmem:[#allocation8 + $0x10] sm:$0xff]
    %v186 = vld [vmem:[#allocation8 + $0x18] sm:$0xff]
    %v187 = vld [vmem:[#allocation8 + $0x20] sm:$0xff]
    %v188 = vld [vmem:[#allocation8 + $0x28] sm:$0xff]
    %v189 = vld [vmem:[#allocation8 + $0x30] sm:$0xff]
    %v190 = vld [vmem:[#allocation8 + $0x38] sm:$0xff]
    %v191 = vld [vmem:[#allocation8 + $0x40] sm:$0xff]
    %v192 = vld [vmem:[#allocation8 + $0x48] sm:$0xff]
    %v193 = vld [vmem:[#allocation8 + $0x50] sm:$0xff]
    %v194 = vld [vmem:[#allocation8 + $0x58] sm:$0xff]
    %v195 = vld [vmem:[#allocation8 + $0x60] sm:$0xff]
    %v196 = vld [vmem:[#allocation8 + $0x68] sm:$0xff]
    %v197 = vld [vmem:[#allocation8 + $0x70] sm:$0xff]
    %v198 = vld [vmem:[#allocation8 + $0x78] sm:$0xff]
    %v199 = vld [vmem:[%s5] sm:$0x1]
    %v201 = vlaneseq
    %v202 = vshrl.u32 %v201, 7
    %v203 = vsub.s32 0, %v202
    %v204 = vrot.slane %v199, %v203
    %206 = vmatprep.subr.mxu0 0.0
    %207 = vmatpush1.msra.mxu0 %v183
    %208 = vmatprep.subr.mxu0 0.0
    %209 = vmatpush1.msra.mxu0 %v184
    %210 = vmatprep.subr.mxu0 0.0
    %211 = vmatpush1.msra.mxu0 %v185
    %212 = vmatprep.subr.mxu0 0.0
    %213 = vmatpush1.msra.mxu0 %v186
    %214 = vmatprep.subr.mxu0 0.0
    %215 = vmatpush1.msra.mxu0 %v187
    %216 = vmatprep.subr.mxu0 0.0
    %217 = vmatpush1.msra.mxu0 %v188
    %218 = vmatprep.subr.mxu0 0.0
    %219 = vmatpush1.msra.mxu0 %v189
    %220 = vmatprep.subr.mxu0 0.0
    %221 = vmatpush1.msra.mxu0 %v190
    %222 = vmatprep.subr.mxu0 0.0
    %223 = vmatpush1.msra.mxu0 %v191
    %224 = vmatprep.subr.mxu0 0.0
    %225 = vmatpush1.msra.mxu0 %v192
    %226 = vmatprep.subr.mxu0 0.0
    %227 = vmatpush1.msra.mxu0 %v193
    %228 = vmatprep.subr.mxu0 0.0
    %229 = vmatpush1.msra.mxu0 %v194
    %230 = vmatprep.subr.mxu0 0.0
    %231 = vmatpush1.msra.mxu0 %v195
    %232 = vmatprep.subr.mxu0 0.0
    %233 = vmatpush1.msra.mxu0 %v196
    %234 = vmatprep.subr.mxu0 0.0
    %235 = vmatpush1.msra.mxu0 %v197
    %236 = vmatprep.subr.mxu0 0.0
    %237 = vmatpush1.msra.mxu0 %v198
    %238 = vmatprep.subr.mxu0 0.0
    %239 = vmatpush1.msra.mxu0 0.0
    %240 = vmatprep.subr.mxu0 0.0
    %241 = vmatpush1.msra.mxu0 0.0
    %242 = vmatprep.subr.mxu0 0.0
    %243 = vmatpush1.msra.mxu0 0.0
    %244 = vmatprep.subr.mxu0 0.0
    %245 = vmatpush1.msra.mxu0 0.0
    %246 = vmatprep.subr.mxu0 0.0
    %247 = vmatpush1.msra.mxu0 0.0
    %248 = vmatprep.subr.mxu0 0.0
    %249 = vmatpush1.msra.mxu0 0.0
    %250 = vmatprep.subr.mxu0 0.0
    %251 = vmatpush1.msra.mxu0 0.0
    %252 = vmatprep.subr.mxu0 0.0
    %253 = vmatpush1.msra.mxu0 0.0
    %254 = vmatprep.subr.mxu0 0.0
    %255 = vmatpush1.msra.mxu0 0.0
    %256 = vmatprep.subr.mxu0 0.0
    %257 = vmatpush1.msra.mxu0 0.0
    %258 = vmatprep.subr.mxu0 0.0
    %259 = vmatpush1.msra.mxu0 0.0
    %260 = vmatprep.subr.mxu0 0.0
    %261 = vmatpush1.msra.mxu0 0.0
    %262 = vmatprep.subr.mxu0 0.0
    %263 = vmatpush1.msra.mxu0 0.0
    %264 = vmatprep.subr.mxu0 0.0
    %265 = vmatpush1.msra.mxu0 0.0
    %266 = vmatprep.subr.mxu0 0.0
    %267 = vmatpush1.msra.mxu0 0.0
    %268 = vmatprep.subr.mxu0 0.0
    %269 = vmatpush1.msra.mxu0 0.0
    %270 = vmatprep.mubr.f32.mxu0 0.0
    %271 = vmatmul.mubr.f32.gmra.mrb[0].mxu0 %v182
    %v272 = vpop.f32.mrb[0].mxu0
    %v273 = vadd.f32 %v204, %v272
    %v274 = vpop.f32.mrb[0].mxu0
    %275 = vdwg.mxu0
    %vm276 = vcmp.gt.f32.partialorder %v273, 0.0
    %v277 = vmul.f32 %v180, %v273
    %v278 = vsel %vm276, %v273, %v277
    %v279 = vld [vmem:[#allocation9] sm:$0xff]
    %v280 = vld [vmem:[#allocation9 + $0x8] sm:$0xff]
    %v281 = vld [vmem:[#allocation9 + $0x10] sm:$0xff]
    %v282 = vld [vmem:[#allocation9 + $0x18] sm:$0xff]
    %v283 = vld [vmem:[#allocation9 + $0x20] sm:$0xff]
    %v284 = vld [vmem:[#allocation9 + $0x28] sm:$0xff]
    %v285 = vld [vmem:[#allocation9 + $0x30] sm:$0xff]
    %v286 = vld [vmem:[#allocation9 + $0x38] sm:$0xff]
    %v287 = vld [vmem:[#allocation9 + $0x40] sm:$0xff]
    %v288 = vld [vmem:[#allocation9 + $0x48] sm:$0xff]
    %v289 = vld [vmem:[#allocation9 + $0x50] sm:$0xff]
    %v290 = vld [vmem:[#allocation9 + $0x58] sm:$0xff]
    %v291 = vld [vmem:[#allocation9 + $0x60] sm:$0xff]
    %v292 = vld [vmem:[#allocation9 + $0x68] sm:$0xff]
    %v293 = vld [vmem:[#allocation9 + $0x70] sm:$0xff]
    %v294 = vld [vmem:[#allocation9 + $0x78] sm:$0xff]
    %v295 = vld [vmem:[%s7] sm:$0x1]
    %v297 = vlaneseq
    %v298 = vshrl.u32 %v297, 7
    %v299 = vsub.s32 0, %v298
    %v300 = vrot.slane %v295, %v299
    %302 = vmatprep.subr.mxu0 0.0
    %303 = vmatpush1.msra.mxu0 %v279
    %304 = vmatprep.subr.mxu0 0.0
    %305 = vmatpush1.msra.mxu0 %v280
    %306 = vmatprep.subr.mxu0 0.0
    %307 = vmatpush1.msra.mxu0 %v281
    %308 = vmatprep.subr.mxu0 0.0
    %309 = vmatpush1.msra.mxu0 %v282
    %310 = vmatprep.subr.mxu0 0.0
    %311 = vmatpush1.msra.mxu0 %v283
    %312 = vmatprep.subr.mxu0 0.0
    %313 = vmatpush1.msra.mxu0 %v284
    %314 = vmatprep.subr.mxu0 0.0
    %315 = vmatpush1.msra.mxu0 %v285
    %316 = vmatprep.subr.mxu0 0.0
    %317 = vmatpush1.msra.mxu0 %v286
    %318 = vmatprep.subr.mxu0 0.0
    %319 = vmatpush1.msra.mxu0 %v287
    %320 = vmatprep.subr.mxu0 0.0
    %321 = vmatpush1.msra.mxu0 %v288
    %322 = vmatprep.subr.mxu0 0.0
    %323 = vmatpush1.msra.mxu0 %v289
    %324 = vmatprep.subr.mxu0 0.0
    %325 = vmatpush1.msra.mxu0 %v290
    %326 = vmatprep.subr.mxu0 0.0
    %327 = vmatpush1.msra.mxu0 %v291
    %328 = vmatprep.subr.mxu0 0.0
    %329 = vmatpush1.msra.mxu0 %v292
    %330 = vmatprep.subr.mxu0 0.0
    %331 = vmatpush1.msra.mxu0 %v293
    %332 = vmatprep.subr.mxu0 0.0
    %333 = vmatpush1.msra.mxu0 %v294
    %334 = vmatprep.subr.mxu0 0.0
    %335 = vmatpush1.msra.mxu0 0.0
    %336 = vmatprep.subr.mxu0 0.0
    %337 = vmatpush1.msra.mxu0 0.0
    %338 = vmatprep.subr.mxu0 0.0
    %339 = vmatpush1.msra.mxu0 0.0
    %340 = vmatprep.subr.mxu0 0.0
    %341 = vmatpush1.msra.mxu0 0.0
    %342 = vmatprep.subr.mxu0 0.0
    %343 = vmatpush1.msra.mxu0 0.0
    %344 = vmatprep.subr.mxu0 0.0
    %345 = vmatpush1.msra.mxu0 0.0
    %346 = vmatprep.subr.mxu0 0.0
    %347 = vmatpush1.msra.mxu0 0.0
    %348 = vmatprep.subr.mxu0 0.0
    %349 = vmatpush1.msra.mxu0 0.0
    %350 = vmatprep.subr.mxu0 0.0
    %351 = vmatpush1.msra.mxu0 0.0
    %352 = vmatprep.subr.mxu0 0.0
    %353 = vmatpush1.msra.mxu0 0.0
    %354 = vmatprep.subr.mxu0 0.0
    %355 = vmatpush1.msra.mxu0 0.0
    %356 = vmatprep.subr.mxu0 0.0
    %357 = vmatpush1.msra.mxu0 0.0
    %358 = vmatprep.subr.mxu0 0.0
    %359 = vmatpush1.msra.mxu0 0.0
    %360 = vmatprep.subr.mxu0 0.0
    %361 = vmatpush1.msra.mxu0 0.0
    %362 = vmatprep.subr.mxu0 0.0
    %363 = vmatpush1.msra.mxu0 0.0
    %364 = vmatprep.subr.mxu0 0.0
    %365 = vmatpush1.msra.mxu0 0.0
    %366 = vmatprep.mubr.f32.mxu0 0.0
    %367 = vmatmul.mubr.f32.gmra.mrb[0].mxu0 %v278
    %v368 = vpop.f32.mrb[0].mxu0
    %v369 = vadd.f32 %v300, %v368
    %v370 = vpop.f32.mrb[0].mxu0
    %371 = vdwg.mxu0
    %372 = vst [vmem:[#allocation11] sm:$0xff] %v369
    // Predicated region
    $region50: #{tpu_custom_call.1} parent=1 // pred_check
      _
    $region51: #{tpu_custom_call.1} parent=1 // pred_check_branch
      %374 = sbr.rel (0) target = $region53
    $region52: #{tpu_custom_call.1} parent=1 // pred_region
      %s376 = ssub.s32 128, 128
      %377 = vsyncadd [#allocation5], %s376
      %s379 = sshll.u32 [#allocation11], 4
      %s380 = int_to_ptr.vmem [resolvable:$true] %s379
      %382 = dma.vmem_to_hbm [thread:$0]  %s380, 128, %s8, [#allocation5]
    $region53: #{tpu_custom_call.1} parent=1 // pred_fallthru
      _
    // Predicated region
    $region54: #{tpu_custom_call.1} parent=1 // pred_check
      _
    $region55: #{tpu_custom_call.1} parent=1 // pred_check_branch
      %384 = sbr.rel (0) target = $region57
    $region56: #{tpu_custom_call.1} parent=1 // pred_region
      %385 = dma.done [#allocation5], 128
    $region57: #{tpu_custom_call.1} parent=1 // pred_fallthru
      _
    %386 = vsyncpa [#allocation4], 1
    %387 = vsyncpa [#allocation7], 1
    %388 = vsyncpa [#allocation10], 1
    %389 = vsyncpa [#allocation5], 1

</llo_original>
